<compile_context>
chip_gen: v6e
topology: v6e:2x2x1
jax: 0.10.0
libtpu: 0.0.40
codegen_flags: <defaults>
</compile_context>

<pallas_src>
import math
import functools

import jax
import jax.numpy as jnp
from jax import lax
from jax.experimental import pallas as pl
from jax.experimental.pallas import tpu as pltpu


def _cer_kernel(x_ref, es_ref, eo_ref, m_ref,
                wqkv_ref, bqkv_ref, ww_ref, bw_ref, out_ref, *, d_h, bb):
    d2 = 2 * d_h
    s = x_ref.shape[0]
    r = s * bb                                    # rows handled this grid step

    # (S, BB, D2) -> (R, D2): leading-dim collapse, layout-preserving (free).
    x = x_ref[...].reshape(r, d2)
    es = es_ref[...].reshape(r, d2)
    eo = eo_ref[...].reshape(r, d2)
    m = m_ref[0]                                  # (R, 2R) packed [intra | inter]
    mi = m[:, :r]
    mo = m[:, r:]

    # --- Fused projections: one (R, 3*D2) and one (2R, D2) MXU matmul --------
    qkv = jnp.dot(x, wqkv_ref[...], preferred_element_type=jnp.float32) + bqkv_ref[0]
    q = qkv[:, :d2]                               # query_intra == query_inter
    k_base = qkv[:, d2:2 * d2]
    v_base = qkv[:, 2 * d2:]

    e_both = jnp.concatenate([es, eo], axis=0)                     # (2R, D2)
    w_both = jnp.dot(e_both, ww_ref[...], preferred_element_type=jnp.float32) + bw_ref[0]
    w_self, w_oth = w_both[:r, :], w_both[r:, :]

    k_intra = k_base + w_self
    v_intra = v_base + w_self
    k_inter = k_base + w_oth
    v_inter = v_base + w_oth

    # --- Block-diagonal masked attention over R = BB*S flattened rows --------
    # Cross-batch entries have mi = mo = 0 -> score -1e9 -> exp underflows to
    # exactly 0, so this matches per-batch softmax bit-for-bit in practice.
    q_s = q * (1.0 / math.sqrt(d_h))              # scale only the score operand
    dn = (((1,), (1,)), ((), ()))                 # contract last dims; no .T copy
    s_intra = lax.dot_general(q_s, k_intra, dn,
                              preferred_element_type=jnp.float32) * mi
    s_inter = lax.dot_general(q_s, k_inter, dn,
                              preferred_element_type=jnp.float32) * mo
    mask = mi + mo
    scores = jnp.where(mask == 0, jnp.float32(-1000000000.0), s_intra + s_inter)

    mmax = jnp.max(scores, axis=-1, keepdims=True)
    e = jnp.exp(scores - mmax)
    probs = e * pl.reciprocal(jnp.sum(e, axis=-1, keepdims=True), approx=False)

    p_intra = probs * mi
    p_inter = probs * mo

    effect = (jnp.dot(p_intra, v_intra, preferred_element_type=jnp.float32) +
              jnp.dot(p_inter, v_inter, preferred_element_type=jnp.float32))
    cause = jnp.dot(p_intra + p_inter, q, preferred_element_type=jnp.float32)

    if d2 % 128 == 0:
        # Two lane-aligned, unmasked sub-stores (no concat copies).
        out_ref[:, :, :d2] = effect.reshape(s, bb, d2).astype(out_ref.dtype)
        out_ref[:, :, d2:] = cause.reshape(s, bb, d2).astype(out_ref.dtype)
    else:
        out = jnp.concatenate([effect, cause], axis=-1)            # (R, 4*D_h)
        out_ref[...] = out.reshape(s, bb, 2 * d2).astype(out_ref.dtype)


def _choose_bb(B, S):
    """Batches per grid step: BB*S ~ 256 rows (fills v6e/v7x MXU; >=128 on v5e)."""
    bb = max(1, 256 // max(1, S))
    if bb >= B:
        # Whole batch fits in one ~256-row step.  Split in two for the v7x
        # megacore only if both halves stay MXU-filled and 8-aligned.
        half = B // 2
        if B % 2 == 0 and half % 8 == 0 and half * S >= 128:
            return half
        return B
    return max(8, (bb // 8) * 8)   # keep the second-minor block dim 8-aligned


def cause_effect_reasoning(inter_features, intra_mask, inter_mask,
                           effects_from_self, effects_from_others, params, d_h):
    """inter_features: (B, S, 2*D_h); effects_*: (S, B, 2*D_h); masks: (B, S, S).
    Returns (S, B, 4*D_h), matching final_features.transpose(0, 1)."""
    B, S, D2 = inter_features.shape
    D4 = 2 * D2
    assert D2 == 2 * d_h

    wq, bq, wk, bk, wv, bv, ww, bw = params           # W: (2D, 2D), b: (1, 2D)
    # Pack query/key/value -> a single in-kernel MXU call for the projections.
    wqkv = jnp.concatenate([wq, wk, wv], axis=1)      # (2D, 6D)
    bqkv = jnp.concatenate([bq, bk, bv], axis=1)      # (1, 6D)

    bb = _choose_bb(B, S)
    G = pl.cdiv(B, bb)
    B_pad = G * bb
    R = bb * S

    def pad_b(a, axis):
        if B_pad == B:
            return a
        w = [(0, 0)] * a.ndim
        w[axis] = (0, B_pad - B)
        return jnp.pad(a, w)

    # Seq-major rows (row = seq*BB + batch): effects and output are already
    # (S, B, .); only inter_features needs one wrapper transpose.
    x_sm = pad_b(jnp.transpose(inter_features, (1, 0, 2)), 1)      # (S, B_pad, D2)
    es = pad_b(effects_from_self, 1)                               # (S, B_pad, D2)
    eo = pad_b(effects_from_others, 1)

    # Block-diagonal masks over the R rows of each batch group; intra & inter
    # packed lane-wise into one (G, R, 2R) input (one mask DMA per step).
    mi = pad_b(intra_mask, 0).reshape(G, bb, S, S)
    mo = pad_b(inter_mask, 0).reshape(G, bb, S, S)
    eye = jnp.eye(bb, dtype=inter_features.dtype)
    bd = lambda m: jnp.einsum('gbij,bc->gibjc', m, eye).reshape(G, R, R)
    masks = jnp.concatenate([bd(mi), bd(mo)], axis=-1)             # (G, R, 2R)

    eff_spec = pl.BlockSpec((S, bb, D2), lambda g: (0, g, 0))
    full2d = lambda g: (0, 0)   # constant block index -> weights stay resident

    out = pl.pallas_call(
        functools.partial(_cer_kernel, d_h=d_h, bb=bb),
        out_shape=jax.ShapeDtypeStruct((S, B_pad, D4), jnp.float32),
        grid_spec=pltpu.PrefetchScalarGridSpec(
            num_scalar_prefetch=0,
            grid=(G,),
            in_specs=[
                eff_spec,                                     # inter_features (seq-major)
                eff_spec,                                     # effects_from_self
                eff_spec,                                     # effects_from_others
                pl.BlockSpec((1, R, 2 * R), lambda g: (g, 0, 0)),   # packed masks
                pl.BlockSpec((D2, 3 * D2), full2d),           # W_qkv (packed)
                pl.BlockSpec((1, 3 * D2), full2d),            # b_qkv (packed)
                pl.BlockSpec((D2, D2), full2d),               # W_w (self.weight)
                pl.BlockSpec((1, D2), full2d),                # b_w
            ],
            out_specs=pl.BlockSpec((S, bb, D4), lambda g: (0, g, 0)),
        ),
        compiler_params=pltpu.CompilerParams(
            dimension_semantics=("parallel",)),               # shards over v7x TCs
    )(x_sm, es, eo, masks, wqkv, bqkv, ww, bw)

    return out if B_pad == B else out[:, :B, :]


def _reference(inter_features, intra_mask, inter_mask, eself, eoth, params, d_h):
    """Pure-JAX reference mirroring the PyTorch forward (dropout = identity)."""
    wq, bq, wk, bk, wv, bv, ww, bw = params
    lin = lambda x, w, b: x @ w + b[0]
    x = inter_features
    es = jnp.transpose(eself, (1, 0, 2))
    eo = jnp.transpose(eoth, (1, 0, 2))
    q = lin(x, wq, bq)
    ki = lin(x, wk, bk) + lin(es, ww, bw)
    vi = lin(x, wv, bv) + lin(es, ww, bw)
    ke = lin(x, wk, bk) + lin(eo, ww, bw)
    ve = lin(x, wv, bv) + lin(eo, ww, bw)
    si = jnp.einsum('bqd,bkd->bqk', q, ki) / math.sqrt(d_h) * intra_mask
    se = jnp.einsum('bqd,bkd->bqk', q, ke) / math.sqrt(d_h) * inter_mask
    mask = intra_mask + inter_mask
    scores = jnp.where(mask == 0, -1e9, si + se)
    probs = jax.nn.softmax(scores, axis=-1)
    effect = jnp.einsum('bqk,bkd->bqd', probs * intra_mask, vi) + \
             jnp.einsum('bqk,bkd->bqd', probs * inter_mask, ve)
    cause = jnp.einsum('bqk,bkd->bqd', probs * intra_mask, q) + \
            jnp.einsum('bqk,bkd->bqd', probs * inter_mask, q)
    return jnp.transpose(jnp.concatenate([effect, cause], axis=-1), (1, 0, 2))


def _run_case(key, B, S, D_h, atol=1e-4, rtol=5e-4):
    D2 = 2 * D_h
    keys = jax.random.split(key, 12)

    inter_features = jax.random.normal(keys[0], (B, S, D2), dtype=jnp.float32)
    effects_from_self = jax.random.normal(keys[1], (S, B, D2), dtype=jnp.float32)
    effects_from_others = jax.random.normal(keys[2], (S, B, D2), dtype=jnp.float32)

    # Complementary binary masks (every row has at least one unmasked key).
    intra_mask = (jax.random.uniform(keys[3], (B, S, S)) > 0.5).astype(jnp.float32)
    inter_mask = 1.0 - intra_mask

    scale = 1.0 / math.sqrt(D2)
    def p(i, shape):
        return jax.random.normal(keys[i], shape, dtype=jnp.float32) * scale
    wq, bq = p(4, (D2, D2)), p(5, (1, D2))
    wk, bk = p(6, (D2, D2)), p(7, (1, D2))
    wv, bv = p(8, (D2, D2)), p(9, (1, D2))
    ww, bw = p(10, (D2, D2)), p(11, (1, D2))
    params = (wq, bq, wk, bk, wv, bv, ww, bw)

    out = cause_effect_reasoning(inter_features, intra_mask, inter_mask,
                                 effects_from_self, effects_from_others,
                                 params, D_h)
    out = jax.block_until_ready(out)

    ref = _reference(inter_features, intra_mask, inter_mask,
                     effects_from_self, effects_from_others, params, D_h)
    assert out.shape == (S, B, 4 * D_h), out.shape
    assert jnp.allclose(out, ref, atol=atol, rtol=rtol), "mismatch vs reference"


if __name__ == "__main__":
    key = jax.random.PRNGKey(0)
    k1, k2, k3 = jax.random.split(key, 3)
    # Lane-aligned path (2*D_h = 128): two aligned sub-stores, single grid step.
    _run_case(k1, B=2, S=8, D_h=64)
    # Unaligned feature path (2*D_h = 64): single concatenated store.
    _run_case(k2, B=2, S=8, D_h=32)
    # Batch-blocked multi-step path: BB=32 -> R=256 rows/step, G=2, B padded 40->64.
    _run_case(k3, B=40, S=8, D_h=64, atol=1e-3, rtol=2e-3)
    print("KERNEL_OK")
</pallas_src>

<mosaic_0001>
module attributes {stable_mosaic.version = 11 : i64} {
  func.func @_cer_kernel(%arg0: i32, %arg1: memref<8x2x128xf32, #tpu.memory_space<vmem>>, %arg2: memref<8x2x128xf32, #tpu.memory_space<vmem>>, %arg3: memref<8x2x128xf32, #tpu.memory_space<vmem>>, %arg4: memref<1x16x32xf32, #tpu.memory_space<vmem>>, %arg5: memref<128x384xf32, #tpu.memory_space<vmem>>, %arg6: memref<1x384xf32, #tpu.memory_space<vmem>>, %arg7: memref<128x128xf32, #tpu.memory_space<vmem>>, %arg8: memref<1x128xf32, #tpu.memory_space<vmem>>, %arg9: memref<8x2x256xf32, #tpu.memory_space<vmem>>) attributes {dimension_semantics = [#tpu.dimension_semantics<parallel>], iteration_bounds = array<i64: 1>, scalar_prefetch = 0 : i64, scratch_operands = 0 : i64, tpu.core_type = #tpu.core_type<tc>, window_params = [{transform_indices = @transform_0, window_bounds = array<i64: 8, 2, 128>}, {transform_indices = @transform_1, window_bounds = array<i64: 8, 2, 128>}, {transform_indices = @transform_2, window_bounds = array<i64: 8, 2, 128>}, {transform_indices = @transform_3, window_bounds = array<i64: 1, 16, 32>}, {pipeline_mode = #tpu.pipeline_mode<synchronous>, transform_indices = @transform_4, window_bounds = array<i64: 128, 384>}, {pipeline_mode = #tpu.pipeline_mode<synchronous>, transform_indices = @transform_5, window_bounds = array<i64: 1, 384>}, {pipeline_mode = #tpu.pipeline_mode<synchronous>, transform_indices = @transform_6, window_bounds = array<i64: 128, 128>}, {pipeline_mode = #tpu.pipeline_mode<synchronous>, transform_indices = @transform_7, window_bounds = array<i64: 1, 128>}, {transform_indices = @transform_8, window_bounds = array<i64: 8, 2, 256>}]} {
    %c0 = arith.constant 0 : index
    %c0_0 = arith.constant 0 : index
    %c0_1 = arith.constant 0 : index
    %0 = vector.load %arg1[%c0, %c0_0, %c0_1] : memref<8x2x128xf32, #tpu.memory_space<vmem>>, vector<8x2x128xf32>
    %1 = vector.shape_cast %0 : vector<8x2x128xf32> to vector<16x128xf32>
    %c0_2 = arith.constant 0 : index
    %c0_3 = arith.constant 0 : index
    %c0_4 = arith.constant 0 : index
    %2 = vector.load %arg2[%c0_2, %c0_3, %c0_4] : memref<8x2x128xf32, #tpu.memory_space<vmem>>, vector<8x2x128xf32>
    %3 = vector.shape_cast %2 : vector<8x2x128xf32> to vector<16x128xf32>
    %c0_5 = arith.constant 0 : index
    %c0_6 = arith.constant 0 : index
    %c0_7 = arith.constant 0 : index
    %4 = vector.load %arg3[%c0_5, %c0_6, %c0_7] : memref<8x2x128xf32, #tpu.memory_space<vmem>>, vector<8x2x128xf32>
    %5 = vector.shape_cast %4 : vector<8x2x128xf32> to vector<16x128xf32>
    %c0_8 = arith.constant 0 : index
    %c0_9 = arith.constant 0 : index
    %c0_10 = arith.constant 0 : index
    %6 = vector.load %arg4[%c0_8, %c0_9, %c0_10] : memref<1x16x32xf32, #tpu.memory_space<vmem>>, vector<1x16x32xf32>
    %7 = vector.shape_cast %6 : vector<1x16x32xf32> to vector<16x32xf32>
    %8 = vector.extract_strided_slice %7 {offsets = [0, 0], sizes = [16, 16], strides = [1, 1]} : vector<16x32xf32> to vector<16x16xf32>
    %9 = vector.extract_strided_slice %7 {offsets = [0, 16], sizes = [16, 16], strides = [1, 1]} : vector<16x32xf32> to vector<16x16xf32>
    %c0_11 = arith.constant 0 : index
    %c0_12 = arith.constant 0 : index
    %10 = vector.load %arg5[%c0_11, %c0_12] : memref<128x384xf32, #tpu.memory_space<vmem>>, vector<128x384xf32>
    %cst = arith.constant dense<0.000000e+00> : vector<16x384xf32>
    %11 = tpu.matmul %1, %10, %cst {dimension_numbers = #tpu.dot_dimension_numbers<[1], [0], [0], [1], [0, 0, 1, 1], [], []>} : vector<16x128xf32>, vector<128x384xf32>, vector<16x384xf32> -> vector<16x384xf32>
    %c0_13 = arith.constant 0 : index
    %c0_14 = arith.constant 0 : index
    %12 = vector.load %arg6[%c0_13, %c0_14] : memref<1x384xf32, #tpu.memory_space<vmem>>, vector<1x384xf32>
    %13 = vector.shape_cast %12 : vector<1x384xf32> to vector<384xf32>
    %14 = vector.shape_cast %13 : vector<384xf32> to vector<1x384xf32>
    %15 = vector.broadcast %14 : vector<1x384xf32> to vector<16x384xf32>
    %16 = arith.addf %11, %15 : vector<16x384xf32>
    %17 = vector.extract_strided_slice %16 {offsets = [0, 0], sizes = [16, 128], strides = [1, 1]} : vector<16x384xf32> to vector<16x128xf32>
    %18 = vector.extract_strided_slice %16 {offsets = [0, 128], sizes = [16, 128], strides = [1, 1]} : vector<16x384xf32> to vector<16x128xf32>
    %19 = vector.extract_strided_slice %16 {offsets = [0, 256], sizes = [16, 128], strides = [1, 1]} : vector<16x384xf32> to vector<16x128xf32>
    %20 = tpu.concatenate %3, %5 in 0 : vector<16x128xf32>, vector<16x128xf32> -> vector<32x128xf32>
    %c0_15 = arith.constant 0 : index
    %c0_16 = arith.constant 0 : index
    %21 = vector.load %arg7[%c0_15, %c0_16] : memref<128x128xf32, #tpu.memory_space<vmem>>, vector<128x128xf32>
    %cst_17 = arith.constant dense<0.000000e+00> : vector<32x128xf32>
    %22 = tpu.matmul %20, %21, %cst_17 {dimension_numbers = #tpu.dot_dimension_numbers<[1], [0], [0], [1], [0, 0, 1, 1], [], []>} : vector<32x128xf32>, vector<128x128xf32>, vector<32x128xf32> -> vector<32x128xf32>
    %c0_18 = arith.constant 0 : index
    %c0_19 = arith.constant 0 : index
    %23 = vector.load %arg8[%c0_18, %c0_19] : memref<1x128xf32, #tpu.memory_space<vmem>>, vector<1x128xf32>
    %24 = vector.shape_cast %23 : vector<1x128xf32> to vector<128xf32>
    %25 = vector.shape_cast %24 : vector<128xf32> to vector<1x128xf32>
    %26 = vector.broadcast %25 : vector<1x128xf32> to vector<32x128xf32>
    %27 = arith.addf %22, %26 : vector<32x128xf32>
    %28 = vector.extract_strided_slice %27 {offsets = [0, 0], sizes = [16, 128], strides = [1, 1]} : vector<32x128xf32> to vector<16x128xf32>
    %29 = vector.extract_strided_slice %27 {offsets = [16, 0], sizes = [16, 128], strides = [1, 1]} : vector<32x128xf32> to vector<16x128xf32>
    %30 = arith.addf %18, %28 : vector<16x128xf32>
    %31 = arith.addf %19, %28 : vector<16x128xf32>
    %32 = arith.addf %18, %29 : vector<16x128xf32>
    %33 = arith.addf %19, %29 : vector<16x128xf32>
    %cst_20 = arith.constant 1.250000e-01 : f32
    %34 = vector.broadcast %cst_20 : f32 to vector<16x128xf32>
    %35 = arith.mulf %17, %34 : vector<16x128xf32>
    %cst_21 = arith.constant dense<0.000000e+00> : vector<16x16xf32>
    %36 = tpu.matmul %35, %30, %cst_21 {dimension_numbers = #tpu.dot_dimension_numbers<[1], [1], [0], [0], [0, 0, 1, 0], [], []>} : vector<16x128xf32>, vector<16x128xf32>, vector<16x16xf32> -> vector<16x16xf32>
    %37 = arith.mulf %36, %8 : vector<16x16xf32>
    %cst_22 = arith.constant dense<0.000000e+00> : vector<16x16xf32>
    %38 = tpu.matmul %35, %32, %cst_22 {dimension_numbers = #tpu.dot_dimension_numbers<[1], [1], [0], [0], [0, 0, 1, 0], [], []>} : vector<16x128xf32>, vector<16x128xf32>, vector<16x16xf32> -> vector<16x16xf32>
    %39 = arith.mulf %38, %9 : vector<16x16xf32>
    %40 = arith.addf %8, %9 : vector<16x16xf32>
    %cst_23 = arith.constant 0.000000e+00 : f32
    %41 = vector.broadcast %cst_23 : f32 to vector<16x16xf32>
    %42 = arith.cmpf oeq, %40, %41 : vector<16x16xf32>
    %43 = arith.addf %37, %39 : vector<16x16xf32>
    %cst_24 = arith.constant -1.000000e+09 : f32
    %44 = vector.broadcast %cst_24 : f32 to vector<16x16xf32>
    %45 = arith.select %42, %44, %43 : vector<16x16xi1>, vector<16x16xf32>
    %cst_25 = arith.constant dense<0xFF800000> : vector<16xf32>
    %46 = vector.multi_reduction <maximumf>, %45, %cst_25 [1] : vector<16x16xf32> to vector<16xf32>
    %47 = vector.shape_cast %46 : vector<16xf32> to vector<16x1xf32>
    %48 = vector.broadcast %47 : vector<16x1xf32> to vector<16x16xf32>
    %49 = arith.subf %45, %48 : vector<16x16xf32>
    %50 = math.exp %49 : vector<16x16xf32>
    %cst_26 = arith.constant dense<0.000000e+00> : vector<16xf32>
    %51 = vector.multi_reduction <add>, %50, %cst_26 [1] : vector<16x16xf32> to vector<16xf32>
    %52 = vector.shape_cast %51 : vector<16xf32> to vector<16x1xf32>
    %53 = tpu.reciprocal %52 : vector<16x1xf32> -> vector<16x1xf32>
    %54 = vector.broadcast %53 : vector<16x1xf32> to vector<16x16xf32>
    %55 = arith.mulf %50, %54 : vector<16x16xf32>
    %56 = arith.mulf %55, %8 : vector<16x16xf32>
    %57 = arith.mulf %55, %9 : vector<16x16xf32>
    %cst_27 = arith.constant dense<0.000000e+00> : vector<16x128xf32>
    %58 = tpu.matmul %56, %31, %cst_27 {dimension_numbers = #tpu.dot_dimension_numbers<[1], [0], [0], [1], [0, 0, 1, 1], [], []>} : vector<16x16xf32>, vector<16x128xf32>, vector<16x128xf32> -> vector<16x128xf32>
    %cst_28 = arith.constant dense<0.000000e+00> : vector<16x128xf32>
    %59 = tpu.matmul %57, %33, %cst_28 {dimension_numbers = #tpu.dot_dimension_numbers<[1], [0], [0], [1], [0, 0, 1, 1], [], []>} : vector<16x16xf32>, vector<16x128xf32>, vector<16x128xf32> -> vector<16x128xf32>
    %60 = arith.addf %58, %59 : vector<16x128xf32>
    %61 = arith.addf %56, %57 : vector<16x16xf32>
    %cst_29 = arith.constant dense<0.000000e+00> : vector<16x128xf32>
    %62 = tpu.matmul %61, %17, %cst_29 {dimension_numbers = #tpu.dot_dimension_numbers<[1], [0], [0], [1], [0, 0, 1, 1], [], []>} : vector<16x16xf32>, vector<16x128xf32>, vector<16x128xf32> -> vector<16x128xf32>
    %63 = vector.shape_cast %60 : vector<16x128xf32> to vector<8x2x128xf32>
    %c0_30 = arith.constant 0 : index
    %c0_31 = arith.constant 0 : index
    %c0_32 = arith.constant 0 : index
    %64 = vector.load %arg9[%c0_30, %c0_31, %c0_32] : memref<8x2x256xf32, #tpu.memory_space<vmem>>, vector<8x2x128xf32>
    tpu.vector_store %arg9[%c0_30, %c0_31, %c0_32], %63 {strides = array<i32>} : memref<8x2x256xf32, #tpu.memory_space<vmem>>, vector<8x2x128xf32>,
    %65 = vector.shape_cast %62 : vector<16x128xf32> to vector<8x2x128xf32>
    %c0_33 = arith.constant 0 : index
    %c0_34 = arith.constant 0 : index
    %c128 = arith.constant 128 : index
    %66 = vector.load %arg9[%c0_33, %c0_34, %c128] : memref<8x2x256xf32, #tpu.memory_space<vmem>>, vector<8x2x128xf32>
    tpu.vector_store %arg9[%c0_33, %c0_34, %c128], %65 {strides = array<i32>} : memref<8x2x256xf32, #tpu.memory_space<vmem>>, vector<8x2x128xf32>,
    return
  }
  func.func @transform_0(%arg0: i32) -> (i32, i32, i32) {
    %c0_i32 = arith.constant 0 : i32
    %c0_i32_0 = arith.constant 0 : i32
    %c0_i32_1 = arith.constant 0 : i32
    return %c0_i32, %arg0, %c0_i32_0 : i32, i32, i32
  }
  func.func @transform_1(%arg0: i32) -> (i32, i32, i32) {
    %c0_i32 = arith.constant 0 : i32
    %c0_i32_0 = arith.constant 0 : i32
    %c0_i32_1 = arith.constant 0 : i32
    return %c0_i32, %arg0, %c0_i32_0 : i32, i32, i32
  }
  func.func @transform_2(%arg0: i32) -> (i32, i32, i32) {
    %c0_i32 = arith.constant 0 : i32
    %c0_i32_0 = arith.constant 0 : i32
    %c0_i32_1 = arith.constant 0 : i32
    return %c0_i32, %arg0, %c0_i32_0 : i32, i32, i32
  }
  func.func @transform_3(%arg0: i32) -> (i32, i32, i32) {
    %c0_i32 = arith.constant 0 : i32
    %c0_i32_0 = arith.constant 0 : i32
    %c0_i32_1 = arith.constant 0 : i32
    return %arg0, %c0_i32, %c0_i32_0 : i32, i32, i32
  }
  func.func @transform_4(%arg0: i32) -> (i32, i32) {
    %c0_i32 = arith.constant 0 : i32
    %c0_i32_0 = arith.constant 0 : i32
    %c0_i32_1 = arith.constant 0 : i32
    return %c0_i32, %c0_i32_0 : i32, i32
  }
  func.func @transform_5(%arg0: i32) -> (i32, i32) {
    %c0_i32 = arith.constant 0 : i32
    %c0_i32_0 = arith.constant 0 : i32
    %c0_i32_1 = arith.constant 0 : i32
    return %c0_i32, %c0_i32_0 : i32, i32
  }
  func.func @transform_6(%arg0: i32) -> (i32, i32) {
    %c0_i32 = arith.constant 0 : i32
    %c0_i32_0 = arith.constant 0 : i32
    %c0_i32_1 = arith.constant 0 : i32
    return %c0_i32, %c0_i32_0 : i32, i32
  }
  func.func @transform_7(%arg0: i32) -> (i32, i32) {
    %c0_i32 = arith.constant 0 : i32
    %c0_i32_0 = arith.constant 0 : i32
    %c0_i32_1 = arith.constant 0 : i32
    return %c0_i32, %c0_i32_0 : i32, i32
  }
  func.func @transform_8(%arg0: i32) -> (i32, i32, i32) {
    %c0_i32 = arith.constant 0 : i32
    %c0_i32_0 = arith.constant 0 : i32
    %c0_i32_1 = arith.constant 0 : i32
    return %c0_i32, %arg0, %c0_i32_0 : i32, i32, i32
  }
}

</mosaic_0001>

<llo_original>
// kernel: tpu_custom_call.1
$region0: #{tpu_custom_call.1}
  #allocation0 [shape = 'u32[]', space=smem, size = 0x4, offset = 0x4, fixed_abs, tag = 'smem constant byte address 0x4 - core index']
  #allocation1 [shape = 'u32[144,128]{1,0:T(1,128)}', space=vmem, size = 0x12000, scoped, tag = 'internal scratch']
  %s0 = inlined_call_operand.hbm [shape: f32[8,2,128], index: 0, kind: input, shape index: {}]
  %s1 = inlined_call_operand.hbm [shape: f32[8,2,128], index: 1, kind: input, shape index: {}]
  %s2 = inlined_call_operand.hbm [shape: f32[8,2,128], index: 2, kind: input, shape index: {}]
  %s3 = inlined_call_operand.hbm [shape: f32[1,16,32], index: 3, kind: input, shape index: {}]
  %s4 = inlined_call_operand.hbm [shape: f32[128,384], index: 4, kind: input, shape index: {}]
  %s5 = inlined_call_operand.vmem [shape: f32[1,384], index: 5, kind: input, shape index: {}]
  %s6 = inlined_call_operand.hbm [shape: f32[128,128], index: 6, kind: input, shape index: {}]
  %s7 = inlined_call_operand.vmem [shape: f32[1,128], index: 7, kind: input, shape index: {}]
  %s8 = inlined_call_operand.hbm [shape: f32[8,2,256], index: 8, kind: output, shape index: {}]
  %s9 = sld [smem:[#allocation0]]
  $region66: #{tpu_custom_call.1} parent=0
    _
  %s11 = ssub.s32 1, %s9
  %s12 = scalar_select 0, %s11, %s9
  $region1: #{tpu_custom_call.1} parent=0
    #allocation2 [shape = 'u8[8192]{0}', space=vmem, size = 0x2000, scoped, tag = 'input window, operand 0, single buffered']
    #allocation3 [shape = 's32[1]{0}', space=sflag, size = 0x4, scoped, tag = 'scoped memory for tpu_custom_call.1']
    #allocation4 [shape = 's32[1]{0}', space=sflag, size = 0x4, scoped, tag = 'scoped memory for tpu_custom_call.1']
    #allocation5 [shape = 'u8[8192]{0}', space=vmem, size = 0x2000, scoped, tag = 'input window, operand 1, single buffered']
    #allocation6 [shape = 's32[1]{0}', space=sflag, size = 0x4, scoped, tag = 'scoped memory for tpu_custom_call.1']
    #allocation7 [shape = 'u8[8192]{0}', space=vmem, size = 0x2000, scoped, tag = 'input window, operand 2, single buffered']
    #allocation8 [shape = 'u8[8192]{0}', space=vmem, size = 0x2000, scoped, tag = 'input window, operand 3, single buffered']
    #allocation9 [shape = 's32[1]{0}', space=sflag, size = 0x4, scoped, tag = 'scoped memory for tpu_custom_call.1']
    #allocation10 [shape = 'u8[196608]{0}', space=vmem, size = 0x30000, scoped, tag = 'input window, operand 4, single buffered']
    #allocation11 [shape = 'u8[65536]{0}', space=vmem, size = 0x10000, scoped, tag = 'input window, operand 6, single buffered']
    #allocation12 [shape = 's32[1]{0}', space=sflag, size = 0x4, scoped, tag = 'scoped memory for tpu_custom_call.1']
    #allocation13 [shape = 'u8[16384]{0}', space=vmem, size = 0x4000, scoped, tag = 'output window, operand 0, single buffered']
    %13 = vsyncpa [#allocation3], 0
    %14 = vsyncpa [#allocation6], 0
    %15 = vsyncpa [#allocation9], 0
    %16 = vsyncpa [#allocation12], 0
    %17 = vsyncpa [#allocation4], 0
    // Predicated region
    $region2: #{tpu_custom_call.1} parent=1 // pred_check
      _
    $region3: #{tpu_custom_call.1} parent=1 // pred_check_branch
      %19 = sbr.rel (0) target = $region5
    $region4: #{tpu_custom_call.1} parent=1 // pred_region
      %s21 = ssub.s32 256, 256
      %22 = vsyncadd [#allocation3], %s21
      %s23 = sshll.u32 [#allocation2], 4
      %s24 = int_to_ptr.vmem [resolvable:$true] %s23
      %29 = dma.hbm_to_vmem [thread:$0]  %s0, 256, %s24, [#allocation3], 32, 32, 2
    $region5: #{tpu_custom_call.1} parent=1 // pred_fallthru
      _
    // Predicated region
    $region6: #{tpu_custom_call.1} parent=1 // pred_check
      _
    $region7: #{tpu_custom_call.1} parent=1 // pred_check_branch
      %31 = sbr.rel (0) target = $region9
    $region8: #{tpu_custom_call.1} parent=1 // pred_region
      %s33 = ssub.s32 256, 256
      %34 = vsyncadd [#allocation6], %s33
      %s35 = sshll.u32 [#allocation5], 4
      %s36 = int_to_ptr.vmem [resolvable:$true] %s35
      %41 = dma.hbm_to_vmem [thread:$0]  %s1, 256, %s36, [#allocation6], 32, 32, 2
    $region9: #{tpu_custom_call.1} parent=1 // pred_fallthru
      _
    // Predicated region
    $region10: #{tpu_custom_call.1} parent=1 // pred_check
      _
    $region11: #{tpu_custom_call.1} parent=1 // pred_check_branch
      %43 = sbr.rel (0) target = $region13
    $region12: #{tpu_custom_call.1} parent=1 // pred_region
      %s45 = ssub.s32 256, 256
      %46 = vsyncadd [#allocation6], %s45
      %s47 = sshll.u32 [#allocation7], 4
      %s48 = int_to_ptr.vmem [resolvable:$true] %s47
      %53 = dma.hbm_to_vmem [thread:$0]  %s2, 256, %s48, [#allocation6], 32, 32, 2
    $region13: #{tpu_custom_call.1} parent=1 // pred_fallthru
      _
    // Predicated region
    $region14: #{tpu_custom_call.1} parent=1 // pred_check
      _
    $region15: #{tpu_custom_call.1} parent=1 // pred_check_branch
      %55 = sbr.rel (0) target = $region17
    $region16: #{tpu_custom_call.1} parent=1 // pred_region
      %s57 = ssub.s32 256, 256
      %58 = vsyncadd [#allocation9], %s57
      %s59 = sshll.u32 [#allocation8], 4
      %s60 = int_to_ptr.vmem [resolvable:$true] %s59
      %65 = dma.hbm_to_vmem [thread:$0]  %s3, 256, %s60, [#allocation9], 128, 128, 8
    $region17: #{tpu_custom_call.1} parent=1 // pred_fallthru
      _
    // Predicated region
    $region18: #{tpu_custom_call.1} parent=1 // pred_check
      _
    $region19: #{tpu_custom_call.1} parent=1 // pred_check_branch
      %67 = sbr.rel (0) target = $region21
    $region20: #{tpu_custom_call.1} parent=1 // pred_region
      %s69 = ssub.s32 6144, 6144
      %70 = vsyncadd [#allocation9], %s69
      %s71 = sshll.u32 [#allocation10], 4
      %s72 = int_to_ptr.vmem [resolvable:$true] %s71
      %77 = dma.hbm_to_vmem [thread:$0]  %s4, 6144, %s72, [#allocation9], 384, 384, 24
    $region21: #{tpu_custom_call.1} parent=1 // pred_fallthru
      _
    // Predicated region
    $region22: #{tpu_custom_call.1} parent=1 // pred_check
      _
    $region23: #{tpu_custom_call.1} parent=1 // pred_check_branch
      %79 = sbr.rel (0) target = $region25
    $region24: #{tpu_custom_call.1} parent=1 // pred_region
      _
    $region25: #{tpu_custom_call.1} parent=1 // pred_fallthru
      _
    // Predicated region
    $region26: #{tpu_custom_call.1} parent=1 // pred_check
      _
    $region27: #{tpu_custom_call.1} parent=1 // pred_check_branch
      %81 = sbr.rel (0) target = $region29
    $region28: #{tpu_custom_call.1} parent=1 // pred_region
      %s83 = ssub.s32 2048, 2048
      %84 = vsyncadd [#allocation12], %s83
      %s85 = sshll.u32 [#allocation11], 4
      %s86 = int_to_ptr.vmem [resolvable:$true] %s85
      %91 = dma.hbm_to_vmem [thread:$0]  %s6, 2048, %s86, [#allocation12], 128, 128, 8
    $region29: #{tpu_custom_call.1} parent=1 // pred_fallthru
      _
    // Predicated region
    $region30: #{tpu_custom_call.1} parent=1 // pred_check
      _
    $region31: #{tpu_custom_call.1} parent=1 // pred_check_branch
      %93 = sbr.rel (0) target = $region33
    $region32: #{tpu_custom_call.1} parent=1 // pred_region
      _
    $region33: #{tpu_custom_call.1} parent=1 // pred_fallthru
      _
    // Predicated region
    $region34: #{tpu_custom_call.1} parent=1 // pred_check
      _
    $region35: #{tpu_custom_call.1} parent=1 // pred_check_branch
      %95 = sbr.rel (0) target = $region37
    $region36: #{tpu_custom_call.1} parent=1 // pred_region
      %96 = dma.done [#allocation3], 256
    $region37: #{tpu_custom_call.1} parent=1 // pred_fallthru
      _
    // Predicated region
    $region38: #{tpu_custom_call.1} parent=1 // pred_check
      _
    $region39: #{tpu_custom_call.1} parent=1 // pred_check_branch
      %98 = sbr.rel (0) target = $region41
    $region40: #{tpu_custom_call.1} parent=1 // pred_region
      %99 = dma.done [#allocation6], 256
    $region41: #{tpu_custom_call.1} parent=1 // pred_fallthru
      _
    // Predicated region
    $region42: #{tpu_custom_call.1} parent=1 // pred_check
      _
    $region43: #{tpu_custom_call.1} parent=1 // pred_check_branch
      %101 = sbr.rel (0) target = $region45
    $region44: #{tpu_custom_call.1} parent=1 // pred_region
      %102 = dma.done [#allocation6], 256
    $region45: #{tpu_custom_call.1} parent=1 // pred_fallthru
      _
    // Predicated region
    $region46: #{tpu_custom_call.1} parent=1 // pred_check
      _
    $region47: #{tpu_custom_call.1} parent=1 // pred_check_branch
      %104 = sbr.rel (0) target = $region49
    $region48: #{tpu_custom_call.1} parent=1 // pred_region
      %105 = dma.done [#allocation9], 256
    $region49: #{tpu_custom_call.1} parent=1 // pred_fallthru
      _
    // Predicated region
    $region50: #{tpu_custom_call.1} parent=1 // pred_check
      _
    $region51: #{tpu_custom_call.1} parent=1 // pred_check_branch
      %107 = sbr.rel (0) target = $region53
    $region52: #{tpu_custom_call.1} parent=1 // pred_region
      %108 = dma.done [#allocation9], 6144
    $region53: #{tpu_custom_call.1} parent=1 // pred_fallthru
      _
    // Predicated region
    $region54: #{tpu_custom_call.1} parent=1 // pred_check
      _
    $region55: #{tpu_custom_call.1} parent=1 // pred_check_branch
      %110 = sbr.rel (0) target = $region57
    $region56: #{tpu_custom_call.1} parent=1 // pred_region
      %111 = dma.done [#allocation12], 2048
    $region57: #{tpu_custom_call.1} parent=1 // pred_fallthru
      _
    %v112 = vld [vmem:[#allocation2] sm:$0x3]
    %v113 = vld [vmem:[#allocation2 + $0x2] sm:$0x3]
    %v114 = vld [vmem:[#allocation2 + $0x4] sm:$0x3]
    %v115 = vld [vmem:[#allocation2 + $0x6] sm:$0x3]
    %v116 = vld [vmem:[#allocation2 + $0x8] sm:$0x3]
    %v117 = vld [vmem:[#allocation2 + $0xa] sm:$0x3]
    %v118 = vld [vmem:[#allocation2 + $0xc] sm:$0x3]
    %v119 = vld [vmem:[#allocation2 + $0xe] sm:$0x3]
    %v120 = vld [vmem:[#allocation5] sm:$0x3]
    %v121 = vld [vmem:[#allocation5 + $0x2] sm:$0x3]
    %v122 = vld [vmem:[#allocation5 + $0x4] sm:$0x3]
    %v123 = vld [vmem:[#allocation5 + $0x6] sm:$0x3]
    %v124 = vld [vmem:[#allocation5 + $0x8] sm:$0x3]
    %v125 = vld [vmem:[#allocation5 + $0xa] sm:$0x3]
    %v126 = vld [vmem:[#allocation5 + $0xc] sm:$0x3]
    %v127 = vld [vmem:[#allocation5 + $0xe] sm:$0x3]
    %v128 = vld [vmem:[#allocation7] sm:$0x3]
    %v129 = vld [vmem:[#allocation7 + $0x2] sm:$0x3]
    %v130 = vld [vmem:[#allocation7 + $0x4] sm:$0x3]
    %v131 = vld [vmem:[#allocation7 + $0x6] sm:$0x3]
    %v132 = vld [vmem:[#allocation7 + $0x8] sm:$0x3]
    %v133 = vld [vmem:[#allocation7 + $0xa] sm:$0x3]
    %v134 = vld [vmem:[#allocation7 + $0xc] sm:$0x3]
    %v135 = vld [vmem:[#allocation7 + $0xe] sm:$0x3]
    %v136 = vld [vmem:[#allocation8] sm:$0xff]
    %v137 = vld [vmem:[#allocation8 + $0x8] sm:$0xff]
    %v138 = vld [vmem:[#allocation10] sm:$0xff]
    %v139 = vld [vmem:[#allocation10 + $0x8] sm:$0xff]
    %v140 = vld [vmem:[#allocation10 + $0x10] sm:$0xff]
    %v141 = vld [vmem:[#allocation10 + $0x18] sm:$0xff]
    %v142 = vld [vmem:[#allocation10 + $0x20] sm:$0xff]
    %v143 = vld [vmem:[#allocation10 + $0x28] sm:$0xff]
    %v144 = vld [vmem:[#allocation10 + $0x30] sm:$0xff]
    %v145 = vld [vmem:[#allocation10 + $0x38] sm:$0xff]
    %v146 = vld [vmem:[#allocation10 + $0x40] sm:$0xff]
    %v147 = vld [vmem:[#allocation10 + $0x48] sm:$0xff]
    %v148 = vld [vmem:[#allocation10 + $0x50] sm:$0xff]
    %v149 = vld [vmem:[#allocation10 + $0x58] sm:$0xff]
    %v150 = vld [vmem:[#allocation10 + $0x60] sm:$0xff]
    %v151 = vld [vmem:[#allocation10 + $0x68] sm:$0xff]
    %v152 = vld [vmem:[#allocation10 + $0x70] sm:$0xff]
    %v153 = vld [vmem:[#allocation10 + $0x78] sm:$0xff]
    %v154 = vld [vmem:[#allocation10 + $0x80] sm:$0xff]
    %v155 = vld [vmem:[#allocation10 + $0x88] sm:$0xff]
    %v156 = vld [vmem:[#allocation10 + $0x90] sm:$0xff]
    %v157 = vld [vmem:[#allocation10 + $0x98] sm:$0xff]
    %v158 = vld [vmem:[#allocation10 + $0xa0] sm:$0xff]
    %v159 = vld [vmem:[#allocation10 + $0xa8] sm:$0xff]
    %v160 = vld [vmem:[#allocation10 + $0xb0] sm:$0xff]
    %v161 = vld [vmem:[#allocation10 + $0xb8] sm:$0xff]
    %v162 = vld [vmem:[#allocation10 + $0xc0] sm:$0xff]
    %v163 = vld [vmem:[#allocation10 + $0xc8] sm:$0xff]
    %v164 = vld [vmem:[#allocation10 + $0xd0] sm:$0xff]
    %v165 = vld [vmem:[#allocation10 + $0xd8] sm:$0xff]
    %v166 = vld [vmem:[#allocation10 + $0xe0] sm:$0xff]
    %v167 = vld [vmem:[#allocation10 + $0xe8] sm:$0xff]
    %v168 = vld [vmem:[#allocation10 + $0xf0] sm:$0xff]
    %v169 = vld [vmem:[#allocation10 + $0xf8] sm:$0xff]
    %v170 = vld [vmem:[#allocation10 + $0x100] sm:$0xff]
    %v171 = vld [vmem:[#allocation10 + $0x108] sm:$0xff]
    %v172 = vld [vmem:[#allocation10 + $0x110] sm:$0xff]
    %v173 = vld [vmem:[#allocation10 + $0x118] sm:$0xff]
    %v174 = vld [vmem:[#allocation10 + $0x120] sm:$0xff]
    %v175 = vld [vmem:[#allocation10 + $0x128] sm:$0xff]
    %v176 = vld [vmem:[#allocation10 + $0x130] sm:$0xff]
    %v177 = vld [vmem:[#allocation10 + $0x138] sm:$0xff]
    %v178 = vld [vmem:[#allocation10 + $0x140] sm:$0xff]
    %v179 = vld [vmem:[#allocation10 + $0x148] sm:$0xff]
    %v180 = vld [vmem:[#allocation10 + $0x150] sm:$0xff]
    %v181 = vld [vmem:[#allocation10 + $0x158] sm:$0xff]
    %v182 = vld [vmem:[#allocation10 + $0x160] sm:$0xff]
    %v183 = vld [vmem:[#allocation10 + $0x168] sm:$0xff]
    %v184 = vld [vmem:[#allocation10 + $0x170] sm:$0xff]
    %v185 = vld [vmem:[#allocation10 + $0x178] sm:$0xff]
    %v186 = vld [vmem:[%s5] sm:$0x7]
    %v188 = vlaneseq
    %v189 = vshrl.u32 %v188, 7
    %v190 = vsub.s32 0, %v189
    %v191 = vrot.slane %v186, %v190
    %v192 = vlaneseq
    %v193 = vshrl.u32 %v192, 7
    %v194 = vsub.s32 1, %v193
    %v195 = vrot.slane %v186, %v194
    %v196 = vlaneseq
    %v197 = vshrl.u32 %v196, 7
    %v198 = vsub.s32 2, %v197
    %v199 = vrot.slane %v186, %v198
    %v211 = vcombine.low %v112, %v113
    %v212 = vcombine.low %v114, %v115
    %v214 = vunpack.c.l.s4 1983009808
    %v215 = vunpack.c.0.s8 %v214
    %v216 = vlaneseq
    %v217 = vshrl.u32 %v216, 7
    %v218 = vsub.s32 %v215, %v217
    %v219 = vrot.slane %v211, %v218
    %v221 = vunpack.c.l.s4 1983009808
    %v222 = vunpack.c.0.s8 %v221
    %v223 = vlaneseq
    %v224 = vshrl.u32 %v223, 7
    %v225 = vsub.s32 %v222, %v224
    %v226 = vrot.slane %v212, %v225
    %v227 = vcombine.low %v219, %v226
    %v228 = vcombine.low %v116, %v117
    %v229 = vcombine.low %v118, %v119
    %v231 = vunpack.c.l.s4 1983009808
    %v232 = vunpack.c.0.s8 %v231
    %v233 = vlaneseq
    %v234 = vshrl.u32 %v233, 7
    %v235 = vsub.s32 %v232, %v234
    %v236 = vrot.slane %v228, %v235
    %v238 = vunpack.c.l.s4 1983009808
    %v239 = vunpack.c.0.s8 %v238
    %v240 = vlaneseq
    %v241 = vshrl.u32 %v240, 7
    %v242 = vsub.s32 %v239, %v241
    %v243 = vrot.slane %v229, %v242
    %v244 = vcombine.low %v236, %v243
    %247 = vmatprep.subr.mxu0 %v184
    %248 = vmatpush1.msra.mxu0 %v183
    %249 = vmatprep.subr.mxu0 %v181
    %250 = vmatpush1.msra.mxu0 %v180
    %251 = vmatprep.subr.mxu0 %v178
    %252 = vmatpush1.msra.mxu0 %v177
    %253 = vmatprep.subr.mxu0 %v175
    %254 = vmatpush1.msra.mxu0 %v174
    %255 = vmatprep.subr.mxu0 %v172
    %256 = vmatpush1.msra.mxu0 %v171
    %257 = vmatprep.subr.mxu0 %v169
    %258 = vmatpush1.msra.mxu0 %v168
    %259 = vmatprep.subr.mxu0 %v166
    %260 = vmatpush1.msra.mxu0 %v165
    %261 = vmatprep.subr.mxu0 %v163
    %262 = vmatpush1.msra.mxu0 %v162
    %263 = vmatprep.subr.mxu0 %v160
    %264 = vmatpush1.msra.mxu0 %v159
    %265 = vmatprep.subr.mxu0 %v157
    %266 = vmatpush1.msra.mxu0 %v156
    %267 = vmatprep.subr.mxu0 %v154
    %268 = vmatpush1.msra.mxu0 %v153
    %269 = vmatprep.subr.mxu0 %v151
    %270 = vmatpush1.msra.mxu0 %v150
    %271 = vmatprep.subr.mxu0 %v148
    %272 = vmatpush1.msra.mxu0 %v147
    %273 = vmatprep.subr.mxu0 %v145
    %274 = vmatpush1.msra.mxu0 %v144
    %275 = vmatprep.subr.mxu0 %v142
    %276 = vmatpush1.msra.mxu0 %v141
    %277 = vmatprep.subr.mxu0 %v139
    %278 = vmatpush1.msra.mxu0 %v138
    %279 = vmatprep.subr.mxu0 0.0
    %280 = vmatpush2.msra.mxu0 0.0
    %281 = vmatprep.subr.mxu0 0.0
    %282 = vmatpush2.msra.mxu0 0.0
    %283 = vmatprep.subr.mxu0 0.0
    %284 = vmatpush2.msra.mxu0 0.0
    %285 = vmatprep.subr.mxu0 0.0
    %286 = vmatpush2.msra.mxu0 0.0
    %287 = vmatprep.subr.mxu0 0.0
    %288 = vmatpush2.msra.mxu0 0.0
    %289 = vmatprep.subr.mxu0 0.0
    %290 = vmatpush2.msra.mxu0 0.0
    %291 = vmatprep.subr.mxu0 0.0
    %292 = vmatpush2.msra.mxu0 0.0
    %293 = vmatprep.subr.mxu0 0.0
    %294 = vmatpush2.msra.mxu0 0.0
    %295 = vmatprep.subr.mxu0 0.0
    %296 = vmatpush2.msra.mxu0 0.0
    %297 = vmatprep.subr.mxu0 0.0
    %298 = vmatpush2.msra.mxu0 0.0
    %299 = vmatprep.subr.mxu0 0.0
    %300 = vmatpush2.msra.mxu0 0.0
    %301 = vmatprep.subr.mxu0 0.0
    %302 = vmatpush2.msra.mxu0 0.0
    %303 = vmatprep.subr.mxu0 0.0
    %304 = vmatpush2.msra.mxu0 0.0
    %305 = vmatprep.subr.mxu0 0.0
    %306 = vmatpush2.msra.mxu0 0.0
    %307 = vmatprep.subr.mxu0 0.0
    %308 = vmatpush2.msra.mxu0 0.0
    %309 = vmatprep.subr.mxu0 0.0
    %310 = vmatpush2.msra.mxu0 0.0
    %311 = vmatprep.mubr.f32.mxu0 0.0
    %312 = vmatmul.mubr.f32.gmra.mxu0 %v227
    %v313 = vpop.f32.mrf.mxu0
    %v314 = vadd.f32 %v191, %v313
    %v315 = vpop.f32.mrf.mxu0
    %v316 = vadd.f32 %v195, %v315
    %317 = vmatprep.mubr.f32.mxu0 0.0
    %318 = vmatmul.mubr.f32.gmra.mxu0 %v244
    %v319 = vpop.f32.mrf.mxu0
    %v320 = vadd.f32 %v191, %v319
    %v321 = vpop.f32.mrf.mxu0
    %v322 = vadd.f32 %v195, %v321
    %323 = vdwg.mxu0
    %324 = vmatprep.subr.mxu0 0.0
    %325 = vmatpush1.msra.mxu0 %v185
    %326 = vmatprep.subr.mxu0 0.0
    %327 = vmatpush1.msra.mxu0 %v182
    %328 = vmatprep.subr.mxu0 0.0
    %329 = vmatpush1.msra.mxu0 %v179
    %330 = vmatprep.subr.mxu0 0.0
    %331 = vmatpush1.msra.mxu0 %v176
    %332 = vmatprep.subr.mxu0 0.0
    %333 = vmatpush1.msra.mxu0 %v173
    %334 = vmatprep.subr.mxu0 0.0
    %335 = vmatpush1.msra.mxu0 %v170
    %336 = vmatprep.subr.mxu0 0.0
    %337 = vmatpush1.msra.mxu0 %v167
    %338 = vmatprep.subr.mxu0 0.0
    %339 = vmatpush1.msra.mxu0 %v164
    %340 = vmatprep.subr.mxu0 0.0
    %341 = vmatpush1.msra.mxu0 %v161
    %342 = vmatprep.subr.mxu0 0.0
    %343 = vmatpush1.msra.mxu0 %v158
    %344 = vmatprep.subr.mxu0 0.0
    %345 = vmatpush1.msra.mxu0 %v155
    %346 = vmatprep.subr.mxu0 0.0
    %347 = vmatpush1.msra.mxu0 %v152
    %348 = vmatprep.subr.mxu0 0.0
    %349 = vmatpush1.msra.mxu0 %v149
    %350 = vmatprep.subr.mxu0 0.0
    %351 = vmatpush1.msra.mxu0 %v146
    %352 = vmatprep.subr.mxu0 0.0
    %353 = vmatpush1.msra.mxu0 %v143
    %354 = vmatprep.subr.mxu0 0.0
    %355 = vmatpush1.msra.mxu0 %v140
    %356 = vmatprep.subr.mxu0 0.0
    %357 = vmatpush2.msra.mxu0 0.0
    %358 = vmatprep.subr.mxu0 0.0
    %359 = vmatpush2.msra.mxu0 0.0
    %360 = vmatprep.subr.mxu0 0.0
    %361 = vmatpush2.msra.mxu0 0.0
    %362 = vmatprep.subr.mxu0 0.0
    %363 = vmatpush2.msra.mxu0 0.0
    %364 = vmatprep.subr.mxu0 0.0
    %365 = vmatpush2.msra.mxu0 0.0
    %366 = vmatprep.subr.mxu0 0.0
    %367 = vmatpush2.msra.mxu0 0.0
    %368 = vmatprep.subr.mxu0 0.0
    %369 = vmatpush2.msra.mxu0 0.0
    %370 = vmatprep.subr.mxu0 0.0
    %371 = vmatpush2.msra.mxu0 0.0
    %372 = vmatprep.subr.mxu0 0.0
    %373 = vmatpush2.msra.mxu0 0.0
    %374 = vmatprep.subr.mxu0 0.0
    %375 = vmatpush2.msra.mxu0 0.0
    %376 = vmatprep.subr.mxu0 0.0
    %377 = vmatpush2.msra.mxu0 0.0
    %378 = vmatprep.subr.mxu0 0.0
    %379 = vmatpush2.msra.mxu0 0.0
    %380 = vmatprep.subr.mxu0 0.0
    %381 = vmatpush2.msra.mxu0 0.0
    %382 = vmatprep.subr.mxu0 0.0
    %383 = vmatpush2.msra.mxu0 0.0
    %384 = vmatprep.subr.mxu0 0.0
    %385 = vmatpush2.msra.mxu0 0.0
    %386 = vmatprep.subr.mxu0 0.0
    %387 = vmatpush2.msra.mxu0 0.0
    %388 = vmatprep.mubr.f32.mxu0 0.0
    %389 = vmatmul.mubr.f32.gmra.mxu0 %v227
    %v390 = vpop.f32.mrf.mxu0
    %v391 = vadd.f32 %v199, %v390
    %v392 = vpop.f32.mrf.mxu0
    %393 = vmatprep.mubr.f32.mxu0 0.0
    %394 = vmatmul.mubr.f32.gmra.mxu0 %v244
    %v395 = vpop.f32.mrf.mxu0
    %v396 = vadd.f32 %v199, %v395
    %v397 = vpop.f32.mrf.mxu0
    %398 = vdwg.mxu0
    %v407 = vcombine.low %v120, %v121
    %v408 = vcombine.low %v122, %v123
    %v410 = vunpack.c.l.s4 1983009808
    %v411 = vunpack.c.0.s8 %v410
    %v412 = vlaneseq
    %v413 = vshrl.u32 %v412, 7
    %v414 = vsub.s32 %v411, %v413
    %v415 = vrot.slane %v407, %v414
    %v417 = vunpack.c.l.s4 1983009808
    %v418 = vunpack.c.0.s8 %v417
    %v419 = vlaneseq
    %v420 = vshrl.u32 %v419, 7
    %v421 = vsub.s32 %v418, %v420
    %v422 = vrot.slane %v408, %v421
    %v423 = vcombine.low %v415, %v422
    %v424 = vcombine.low %v124, %v125
    %v425 = vcombine.low %v126, %v127
    %v427 = vunpack.c.l.s4 1983009808
    %v428 = vunpack.c.0.s8 %v427
    %v429 = vlaneseq
    %v430 = vshrl.u32 %v429, 7
    %v431 = vsub.s32 %v428, %v430
    %v432 = vrot.slane %v424, %v431
    %v434 = vunpack.c.l.s4 1983009808
    %v435 = vunpack.c.0.s8 %v434
    %v436 = vlaneseq
    %v437 = vshrl.u32 %v436, 7
    %v438 = vsub.s32 %v435, %v437
    %v439 = vrot.slane %v425, %v438
    %v440 = vcombine.low %v432, %v439
    %v451 = vcombine.low %v128, %v129
    %v452 = vcombine.low %v130, %v131
    %v454 = vunpack.c.l.s4 1983009808
    %v455 = vunpack.c.0.s8 %v454
    %v456 = vlaneseq
    %v457 = vshrl.u32 %v456, 7
    %v458 = vsub.s32 %v455, %v457
    %v459 = vrot.slane %v451, %v458
    %v461 = vunpack.c.l.s4 1983009808
    %v462 = vunpack.c.0.s8 %v461
    %v463 = vlaneseq
    %v464 = vshrl.u32 %v463, 7
    %v465 = vsub.s32 %v462, %v464
    %v466 = vrot.slane %v452, %v465
    %v467 = vcombine.low %v459, %v466
    %v468 = vcombine.low %v132, %v133
    %v469 = vcombine.low %v134, %v135
    %v471 = vunpack.c.l.s4 1983009808
    %v472 = vunpack.c.0.s8 %v471
    %v473 = vlaneseq
    %v474 = vshrl.u32 %v473, 7
    %v475 = vsub.s32 %v472, %v474
    %v476 = vrot.slane %v468, %v475
    %v478 = vunpack.c.l.s4 1983009808
    %v479 = vunpack.c.0.s8 %v478
    %v480 = vlaneseq
    %v481 = vshrl.u32 %v480, 7
    %v482 = vsub.s32 %v479, %v481
    %v483 = vrot.slane %v469, %v482
    %v484 = vcombine.low %v476, %v483
    %v487 = vld [vmem:[#allocation11] sm:$0xff]
    %v488 = vld [vmem:[#allocation11 + $0x8] sm:$0xff]
    %v489 = vld [vmem:[#allocation11 + $0x10] sm:$0xff]
    %v490 = vld [vmem:[#allocation11 + $0x18] sm:$0xff]
    %v491 = vld [vmem:[#allocation11 + $0x20] sm:$0xff]
    %v492 = vld [vmem:[#allocation11 + $0x28] sm:$0xff]
    %v493 = vld [vmem:[#allocation11 + $0x30] sm:$0xff]
    %v494 = vld [vmem:[#allocation11 + $0x38] sm:$0xff]
    %v495 = vld [vmem:[#allocation11 + $0x40] sm:$0xff]
    %v496 = vld [vmem:[#allocation11 + $0x48] sm:$0xff]
    %v497 = vld [vmem:[#allocation11 + $0x50] sm:$0xff]
    %v498 = vld [vmem:[#allocation11 + $0x58] sm:$0xff]
    %v499 = vld [vmem:[#allocation11 + $0x60] sm:$0xff]
    %v500 = vld [vmem:[#allocation11 + $0x68] sm:$0xff]
    %v501 = vld [vmem:[#allocation11 + $0x70] sm:$0xff]
    %v502 = vld [vmem:[#allocation11 + $0x78] sm:$0xff]
    %v503 = vld [vmem:[%s7] sm:$0x1]
    %v505 = vlaneseq
    %v506 = vshrl.u32 %v505, 7
    %v507 = vsub.s32 0, %v506
    %v508 = vrot.slane %v503, %v507
    %510 = vmatprep.subr.mxu0 0.0
    %511 = vmatpush1.msra.mxu0 %v502
    %512 = vmatprep.subr.mxu0 0.0
    %513 = vmatpush1.msra.mxu0 %v501
    %514 = vmatprep.subr.mxu0 0.0
    %515 = vmatpush1.msra.mxu0 %v500
    %516 = vmatprep.subr.mxu0 0.0
    %517 = vmatpush1.msra.mxu0 %v499
    %518 = vmatprep.subr.mxu0 0.0
    %519 = vmatpush1.msra.mxu0 %v498
    %520 = vmatprep.subr.mxu0 0.0
    %521 = vmatpush1.msra.mxu0 %v497
    %522 = vmatprep.subr.mxu0 0.0
    %523 = vmatpush1.msra.mxu0 %v496
    %524 = vmatprep.subr.mxu0 0.0
    %525 = vmatpush1.msra.mxu0 %v495
    %526 = vmatprep.subr.mxu0 0.0
    %527 = vmatpush1.msra.mxu0 %v494
    %528 = vmatprep.subr.mxu0 0.0
    %529 = vmatpush1.msra.mxu0 %v493
    %530 = vmatprep.subr.mxu0 0.0
    %531 = vmatpush1.msra.mxu0 %v492
    %532 = vmatprep.subr.mxu0 0.0
    %533 = vmatpush1.msra.mxu0 %v491
    %534 = vmatprep.subr.mxu0 0.0
    %535 = vmatpush1.msra.mxu0 %v490
    %536 = vmatprep.subr.mxu0 0.0
    %537 = vmatpush1.msra.mxu0 %v489
    %538 = vmatprep.subr.mxu0 0.0
    %539 = vmatpush1.msra.mxu0 %v488
    %540 = vmatprep.subr.mxu0 0.0
    %541 = vmatpush1.msra.mxu0 %v487
    %542 = vmatprep.subr.mxu0 0.0
    %543 = vmatpush2.msra.mxu0 0.0
    %544 = vmatprep.subr.mxu0 0.0
    %545 = vmatpush2.msra.mxu0 0.0
    %546 = vmatprep.subr.mxu0 0.0
    %547 = vmatpush2.msra.mxu0 0.0
    %548 = vmatprep.subr.mxu0 0.0
    %549 = vmatpush2.msra.mxu0 0.0
    %550 = vmatprep.subr.mxu0 0.0
    %551 = vmatpush2.msra.mxu0 0.0
    %552 = vmatprep.subr.mxu0 0.0
    %553 = vmatpush2.msra.mxu0 0.0
    %554 = vmatprep.subr.mxu0 0.0
    %555 = vmatpush2.msra.mxu0 0.0
    %556 = vmatprep.subr.mxu0 0.0
    %557 = vmatpush2.msra.mxu0 0.0
    %558 = vmatprep.subr.mxu0 0.0
    %559 = vmatpush2.msra.mxu0 0.0
    %560 = vmatprep.subr.mxu0 0.0
    %561 = vmatpush2.msra.mxu0 0.0
    %562 = vmatprep.subr.mxu0 0.0
    %563 = vmatpush2.msra.mxu0 0.0
    %564 = vmatprep.subr.mxu0 0.0
    %565 = vmatpush2.msra.mxu0 0.0
    %566 = vmatprep.subr.mxu0 0.0
    %567 = vmatpush2.msra.mxu0 0.0
    %568 = vmatprep.subr.mxu0 0.0
    %569 = vmatpush2.msra.mxu0 0.0
    %570 = vmatprep.subr.mxu0 0.0
    %571 = vmatpush2.msra.mxu0 0.0
    %572 = vmatprep.subr.mxu0 0.0
    %573 = vmatpush2.msra.mxu0 0.0
    %574 = vmatprep.mubr.f32.mxu0 0.0
    %575 = vmatmul.mubr.f32.gmra.mxu0 %v423
    %v576 = vpop.f32.mrf.mxu0
    %v577 = vadd.f32 %v508, %v576
    %v578 = vpop.f32.mrf.mxu0
    %579 = vmatprep.mubr.f32.mxu0 0.0
    %580 = vmatmul.mubr.f32.gmra.mxu0 %v440
    %v581 = vpop.f32.mrf.mxu0
    %v582 = vadd.f32 %v508, %v581
    %v583 = vpop.f32.mrf.mxu0
    %584 = vmatprep.mubr.f32.mxu0 0.0
    %585 = vmatmul.mubr.f32.gmra.mxu0 %v467
    %v586 = vpop.f32.mrf.mxu0
    %v587 = vadd.f32 %v508, %v586
    %v588 = vpop.f32.mrf.mxu0
    %589 = vmatprep.mubr.f32.mxu0 0.0
    %590 = vmatmul.mubr.f32.gmra.mxu0 %v484
    %v591 = vpop.f32.mrf.mxu0
    %v592 = vadd.f32 %v508, %v591
    %v593 = vpop.f32.mrf.mxu0
    %594 = vdwg.mxu0
    %v595 = vadd.f32 %v316, %v577
    %v596 = vadd.f32 %v322, %v582
    %v597 = vadd.f32 %v391, %v577
    %v598 = vadd.f32 %v396, %v582
    %v599 = vadd.f32 %v316, %v587
    %v600 = vadd.f32 %v322, %v592
    %v601 = vadd.f32 %v391, %v587
    %v602 = vadd.f32 %v396, %v592
    %v603 = vmul.f32 %v314, 0.125
    %v604 = vmul.f32 %v320, 0.125
    %605 = vmatprep.subr.mxu0 0.0
    %606 = vmatpush1.xpose.msra.mxu0 0.0
    %607 = vmatprep.subr.mxu0 0.0
    %608 = vmatpush1.xpose.msra.mxu0 0.0
    %609 = vmatprep.subr.mxu0 0.0
    %610 = vmatpush1.xpose.msra.mxu0 0.0
    %611 = vmatprep.subr.mxu0 0.0
    %612 = vmatpush1.xpose.msra.mxu0 0.0
    %613 = vmatprep.subr.mxu0 0.0
    %614 = vmatpush1.xpose.msra.mxu0 0.0
    %615 = vmatprep.subr.mxu0 0.0
    %616 = vmatpush1.xpose.msra.mxu0 0.0
    %617 = vmatprep.subr.mxu0 0.0
    %618 = vmatpush1.xpose.msra.mxu0 0.0
    %619 = vmatprep.subr.mxu0 0.0
    %620 = vmatpush1.xpose.msra.mxu0 0.0
    %621 = vmatprep.subr.mxu0 0.0
    %622 = vmatpush1.xpose.msra.mxu0 0.0
    %623 = vmatprep.subr.mxu0 0.0
    %624 = vmatpush1.xpose.msra.mxu0 0.0
    %625 = vmatprep.subr.mxu0 0.0
    %626 = vmatpush1.xpose.msra.mxu0 0.0
    %627 = vmatprep.subr.mxu0 0.0
    %628 = vmatpush1.xpose.msra.mxu0 0.0
    %629 = vmatprep.subr.mxu0 0.0
    %630 = vmatpush1.xpose.msra.mxu0 0.0
    %631 = vmatprep.subr.mxu0 0.0
    %632 = vmatpush1.xpose.msra.mxu0 0.0
    %633 = vmatprep.subr.mxu0 0.0
    %634 = vmatpush1.xpose.msra.mxu0 %v596
    %635 = vmatprep.subr.mxu0 0.0
    %636 = vmatpush1.xpose.msra.mxu0 %v595
    %637 = vmatprep.subr.mxu0 0.0
    %638 = vmatpush2.xpose.msra.mxu0 0.0
    %639 = vmatprep.subr.mxu0 0.0
    %640 = vmatpush2.xpose.msra.mxu0 0.0
    %641 = vmatprep.subr.mxu0 0.0
    %642 = vmatpush2.xpose.msra.mxu0 0.0
    %643 = vmatprep.subr.mxu0 0.0
    %644 = vmatpush2.xpose.msra.mxu0 0.0
    %645 = vmatprep.subr.mxu0 0.0
    %646 = vmatpush2.xpose.msra.mxu0 0.0
    %647 = vmatprep.subr.mxu0 0.0
    %648 = vmatpush2.xpose.msra.mxu0 0.0
    %649 = vmatprep.subr.mxu0 0.0
    %650 = vmatpush2.xpose.msra.mxu0 0.0
    %651 = vmatprep.subr.mxu0 0.0
    %652 = vmatpush2.xpose.msra.mxu0 0.0
    %653 = vmatprep.subr.mxu0 0.0
    %654 = vmatpush2.xpose.msra.mxu0 0.0
    %655 = vmatprep.subr.mxu0 0.0
    %656 = vmatpush2.xpose.msra.mxu0 0.0
    %657 = vmatprep.subr.mxu0 0.0
    %658 = vmatpush2.xpose.msra.mxu0 0.0
    %659 = vmatprep.subr.mxu0 0.0
    %660 = vmatpush2.xpose.msra.mxu0 0.0
    %661 = vmatprep.subr.mxu0 0.0
    %662 = vmatpush2.xpose.msra.mxu0 0.0
    %663 = vmatprep.subr.mxu0 0.0
    %664 = vmatpush2.xpose.msra.mxu0 0.0
    %665 = vmatprep.subr.mxu0 0.0
    %666 = vmatpush2.xpose.msra.mxu0 0.0
    %667 = vmatprep.subr.mxu0 0.0
    %668 = vmatpush2.xpose.msra.mxu0 0.0
    %669 = vmatprep.mubr.f32.mxu0 0.0
    %670 = vmatmul.mubr.f32.gmra.mxu0 %v603
    %v671 = vpop.f32.mrf.mxu0
    %v672 = vadd.f32 0.0, %v671
    %v673 = vpop.f32.mrf.mxu0
    %674 = vmatprep.mubr.f32.mxu0 0.0
    %675 = vmatmul.mubr.f32.gmra.mxu0 %v604
    %v676 = vpop.f32.mrf.mxu0
    %v677 = vadd.f32 0.0, %v676
    %v678 = vpop.f32.mrf.mxu0
    %679 = vdwg.mxu0
    %v680 = vmul.f32 %v672, %v136
    %v681 = vmul.f32 %v677, %v137
    %682 = vmatprep.subr.mxu0 0.0
    %683 = vmatpush1.xpose.msra.mxu0 0.0
    %684 = vmatprep.subr.mxu0 0.0
    %685 = vmatpush1.xpose.msra.mxu0 0.0
    %686 = vmatprep.subr.mxu0 0.0
    %687 = vmatpush1.xpose.msra.mxu0 0.0
    %688 = vmatprep.subr.mxu0 0.0
    %689 = vmatpush1.xpose.msra.mxu0 0.0
    %690 = vmatprep.subr.mxu0 0.0
    %691 = vmatpush1.xpose.msra.mxu0 0.0
    %692 = vmatprep.subr.mxu0 0.0
    %693 = vmatpush1.xpose.msra.mxu0 0.0
    %694 = vmatprep.subr.mxu0 0.0
    %695 = vmatpush1.xpose.msra.mxu0 0.0
    %696 = vmatprep.subr.mxu0 0.0
    %697 = vmatpush1.xpose.msra.mxu0 0.0
    %698 = vmatprep.subr.mxu0 0.0
    %699 = vmatpush1.xpose.msra.mxu0 0.0
    %700 = vmatprep.subr.mxu0 0.0
    %701 = vmatpush1.xpose.msra.mxu0 0.0
    %702 = vmatprep.subr.mxu0 0.0
    %703 = vmatpush1.xpose.msra.mxu0 0.0
    %704 = vmatprep.subr.mxu0 0.0
    %705 = vmatpush1.xpose.msra.mxu0 0.0
    %706 = vmatprep.subr.mxu0 0.0
    %707 = vmatpush1.xpose.msra.mxu0 0.0
    %708 = vmatprep.subr.mxu0 0.0
    %709 = vmatpush1.xpose.msra.mxu0 0.0
    %710 = vmatprep.subr.mxu0 0.0
    %711 = vmatpush1.xpose.msra.mxu0 %v600
    %712 = vmatprep.subr.mxu0 0.0
    %713 = vmatpush1.xpose.msra.mxu0 %v599
    %714 = vmatprep.subr.mxu0 0.0
    %715 = vmatpush2.xpose.msra.mxu0 0.0
    %716 = vmatprep.subr.mxu0 0.0
    %717 = vmatpush2.xpose.msra.mxu0 0.0
    %718 = vmatprep.subr.mxu0 0.0
    %719 = vmatpush2.xpose.msra.mxu0 0.0
    %720 = vmatprep.subr.mxu0 0.0
    %721 = vmatpush2.xpose.msra.mxu0 0.0
    %722 = vmatprep.subr.mxu0 0.0
    %723 = vmatpush2.xpose.msra.mxu0 0.0
    %724 = vmatprep.subr.mxu0 0.0
    %725 = vmatpush2.xpose.msra.mxu0 0.0
    %726 = vmatprep.subr.mxu0 0.0
    %727 = vmatpush2.xpose.msra.mxu0 0.0
    %728 = vmatprep.subr.mxu0 0.0
    %729 = vmatpush2.xpose.msra.mxu0 0.0
    %730 = vmatprep.subr.mxu0 0.0
    %731 = vmatpush2.xpose.msra.mxu0 0.0
    %732 = vmatprep.subr.mxu0 0.0
    %733 = vmatpush2.xpose.msra.mxu0 0.0
    %734 = vmatprep.subr.mxu0 0.0
    %735 = vmatpush2.xpose.msra.mxu0 0.0
    %736 = vmatprep.subr.mxu0 0.0
    %737 = vmatpush2.xpose.msra.mxu0 0.0
    %738 = vmatprep.subr.mxu0 0.0
    %739 = vmatpush2.xpose.msra.mxu0 0.0
    %740 = vmatprep.subr.mxu0 0.0
    %741 = vmatpush2.xpose.msra.mxu0 0.0
    %742 = vmatprep.subr.mxu0 0.0
    %743 = vmatpush2.xpose.msra.mxu0 0.0
    %744 = vmatprep.subr.mxu0 0.0
    %745 = vmatpush2.xpose.msra.mxu0 0.0
    %746 = vmatprep.mubr.f32.mxu0 0.0
    %747 = vmatmul.mubr.f32.gmra.mxu0 %v603
    %v748 = vpop.f32.mrf.mxu0
    %v749 = vadd.f32 0.0, %v748
    %v750 = vpop.f32.mrf.mxu0
    %751 = vmatprep.mubr.f32.mxu0 0.0
    %752 = vmatmul.mubr.f32.gmra.mxu0 %v604
    %v753 = vpop.f32.mrf.mxu0
    %v754 = vadd.f32 0.0, %v753
    %v755 = vpop.f32.mrf.mxu0
    %756 = vdwg.mxu0
    %759 = vrot.lane.b32.xlu0 %v136, 112
    %v760 = vpop.permute.xlu0 %759
    %761 = vrot.lane.b32.xlu0 %v137, 112
    %v762 = vpop.permute.xlu0 %761
    %v765 = vmul.f32 %v749, %v760
    %v766 = vmul.f32 %v754, %v762
    %v767 = vadd.f32 %v136, %v760
    %v768 = vadd.f32 %v137, %v762
    %vm769 = vcmp.eq.f32.partialorder %v767, 0.0
    %vm770 = vcmp.eq.f32.partialorder %v768, 0.0
    %v771 = vadd.f32 %v680, %v765
    %v772 = vadd.f32 %v681, %v766
    %v773 = vsel %vm769, -1e+09, %v771
    %v774 = vsel %vm770, -1e+09, %v772
    %vm775 = vcmask 130048
    %v776 = vsel %vm775, %v773, -inf
    %777 = vmax.xlane.f32.xlu0 %v776
    %v778 = vpop.xlane.xlu0 %777
    %v779 = vsel %vm775, %v774, -inf
    %780 = vmax.xlane.f32.xlu0 %v779
    %v781 = vpop.xlane.xlu0 %780
    %v782 = vsub.f32 %v773, %v778
    %v783 = vsub.f32 %v774, %v781
    %v784 = vmul.f32 %v782, 1.442695
    %v785 = vpow.pop %v784
    %v786 = vmul.f32 %v783, 1.442695
    %v787 = vpow.pop %v786
    %v788 = vsel %vm775, %v785, 0.0
    %789 = vadd.xlane.f32.xlu0 %v788
    %v790 = vpop.xlane.xlu0 %789
    %v791 = vsel %vm775, %v787, 0.0
    %792 = vadd.xlane.f32.xlu0 %v791
    %v793 = vpop.xlane.xlu0 %792
    %v794 = vrcp.pop %v790
    %v795 = vrcp.pop %v793
    %v796 = vmul.f32 %v785, %v794
    %v797 = vmul.f32 %v787, %v795
    %v798 = vmul.f32 %v796, %v136
    %v799 = vmul.f32 %v797, %v137
    %v800 = vmul.f32 %v796, %v760
    %v801 = vmul.f32 %v797, %v762
    %v803 = vsel %vm775, %v800, 0
    %v806 = vsel %vm775, %v801, 0
    %808 = vmatprep.subr.mxu0 0.0
    %809 = vmatpush1.msra.mxu0 0.0
    %810 = vmatprep.subr.mxu0 0.0
    %811 = vmatpush1.msra.mxu0 0.0
    %812 = vmatprep.subr.mxu0 0.0
    %813 = vmatpush1.msra.mxu0 0.0
    %814 = vmatprep.subr.mxu0 0.0
    %815 = vmatpush1.msra.mxu0 0.0
    %816 = vmatprep.subr.mxu0 0.0
    %817 = vmatpush1.msra.mxu0 0.0
    %818 = vmatprep.subr.mxu0 0.0
    %819 = vmatpush1.msra.mxu0 0.0
    %820 = vmatprep.subr.mxu0 0.0
    %821 = vmatpush1.msra.mxu0 0.0
    %822 = vmatprep.subr.mxu0 0.0
    %823 = vmatpush1.msra.mxu0 0.0
    %824 = vmatprep.subr.mxu0 0.0
    %825 = vmatpush1.msra.mxu0 0.0
    %826 = vmatprep.subr.mxu0 0.0
    %827 = vmatpush1.msra.mxu0 0.0
    %828 = vmatprep.subr.mxu0 0.0
    %829 = vmatpush1.msra.mxu0 0.0
    %830 = vmatprep.subr.mxu0 0.0
    %831 = vmatpush1.msra.mxu0 0.0
    %832 = vmatprep.subr.mxu0 0.0
    %833 = vmatpush1.msra.mxu0 0.0
    %834 = vmatprep.subr.mxu0 0.0
    %835 = vmatpush1.msra.mxu0 0.0
    %836 = vmatprep.subr.mxu0 0.0
    %837 = vmatpush1.msra.mxu0 %v602
    %838 = vmatprep.subr.mxu0 0.0
    %839 = vmatpush1.msra.mxu0 %v601
    %840 = vmatprep.subr.mxu0 0.0
    %841 = vmatpush2.msra.mxu0 0.0
    %842 = vmatprep.subr.mxu0 0.0
    %843 = vmatpush2.msra.mxu0 0.0
    %844 = vmatprep.subr.mxu0 0.0
    %845 = vmatpush2.msra.mxu0 0.0
    %846 = vmatprep.subr.mxu0 0.0
    %847 = vmatpush2.msra.mxu0 0.0
    %848 = vmatprep.subr.mxu0 0.0
    %849 = vmatpush2.msra.mxu0 0.0
    %850 = vmatprep.subr.mxu0 0.0
    %851 = vmatpush2.msra.mxu0 0.0
    %852 = vmatprep.subr.mxu0 0.0
    %853 = vmatpush2.msra.mxu0 0.0
    %854 = vmatprep.subr.mxu0 0.0
    %855 = vmatpush2.msra.mxu0 0.0
    %856 = vmatprep.subr.mxu0 0.0
    %857 = vmatpush2.msra.mxu0 0.0
    %858 = vmatprep.subr.mxu0 0.0
    %859 = vmatpush2.msra.mxu0 0.0
    %860 = vmatprep.subr.mxu0 0.0
    %861 = vmatpush2.msra.mxu0 0.0
    %862 = vmatprep.subr.mxu0 0.0
    %863 = vmatpush2.msra.mxu0 0.0
    %864 = vmatprep.subr.mxu0 0.0
    %865 = vmatpush2.msra.mxu0 0.0
    %866 = vmatprep.subr.mxu0 0.0
    %867 = vmatpush2.msra.mxu0 0.0
    %868 = vmatprep.subr.mxu0 0.0
    %869 = vmatpush2.msra.mxu0 0.0
    %870 = vmatprep.subr.mxu0 0.0
    %871 = vmatpush2.msra.mxu0 0.0
    %872 = vmatprep.mubr.f32.mxu0 0.0
    %873 = vmatmul.mubr.f32.gmra.mxu0 %v803
    %v874 = vpop.f32.mrf.mxu0
    %v875 = vadd.f32 0.0, %v874
    %v876 = vpop.f32.mrf.mxu0
    %877 = vmatprep.mubr.f32.mxu0 0.0
    %878 = vmatmul.mubr.f32.gmra.mxu0 %v806
    %v879 = vpop.f32.mrf.mxu0
    %v880 = vadd.f32 0.0, %v879
    %v881 = vpop.f32.mrf.mxu0
    %882 = vdwg.mxu0
    %v884 = vsel %vm775, %v798, 0
    %v887 = vsel %vm775, %v799, 0
    %889 = vmatprep.subr.mxu0 0.0
    %890 = vmatpush1.msra.mxu0 0.0
    %891 = vmatprep.subr.mxu0 0.0
    %892 = vmatpush1.msra.mxu0 0.0
    %893 = vmatprep.subr.mxu0 0.0
    %894 = vmatpush1.msra.mxu0 0.0
    %895 = vmatprep.subr.mxu0 0.0
    %896 = vmatpush1.msra.mxu0 0.0
    %897 = vmatprep.subr.mxu0 0.0
    %898 = vmatpush1.msra.mxu0 0.0
    %899 = vmatprep.subr.mxu0 0.0
    %900 = vmatpush1.msra.mxu0 0.0
    %901 = vmatprep.subr.mxu0 0.0
    %902 = vmatpush1.msra.mxu0 0.0
    %903 = vmatprep.subr.mxu0 0.0
    %904 = vmatpush1.msra.mxu0 0.0
    %905 = vmatprep.subr.mxu0 0.0
    %906 = vmatpush1.msra.mxu0 0.0
    %907 = vmatprep.subr.mxu0 0.0
    %908 = vmatpush1.msra.mxu0 0.0
    %909 = vmatprep.subr.mxu0 0.0
    %910 = vmatpush1.msra.mxu0 0.0
    %911 = vmatprep.subr.mxu0 0.0
    %912 = vmatpush1.msra.mxu0 0.0
    %913 = vmatprep.subr.mxu0 0.0
    %914 = vmatpush1.msra.mxu0 0.0
    %915 = vmatprep.subr.mxu0 0.0
    %916 = vmatpush1.msra.mxu0 0.0
    %917 = vmatprep.subr.mxu0 0.0
    %918 = vmatpush1.msra.mxu0 %v598
    %919 = vmatprep.subr.mxu0 0.0
    %920 = vmatpush1.msra.mxu0 %v597
    %921 = vmatprep.subr.mxu0 0.0
    %922 = vmatpush2.msra.mxu0 0.0
    %923 = vmatprep.subr.mxu0 0.0
    %924 = vmatpush2.msra.mxu0 0.0
    %925 = vmatprep.subr.mxu0 0.0
    %926 = vmatpush2.msra.mxu0 0.0
    %927 = vmatprep.subr.mxu0 0.0
    %928 = vmatpush2.msra.mxu0 0.0
    %929 = vmatprep.subr.mxu0 0.0
    %930 = vmatpush2.msra.mxu0 0.0
    %931 = vmatprep.subr.mxu0 0.0
    %932 = vmatpush2.msra.mxu0 0.0
    %933 = vmatprep.subr.mxu0 0.0
    %934 = vmatpush2.msra.mxu0 0.0
    %935 = vmatprep.subr.mxu0 0.0
    %936 = vmatpush2.msra.mxu0 0.0
    %937 = vmatprep.subr.mxu0 0.0
    %938 = vmatpush2.msra.mxu0 0.0
    %939 = vmatprep.subr.mxu0 0.0
    %940 = vmatpush2.msra.mxu0 0.0
    %941 = vmatprep.subr.mxu0 0.0
    %942 = vmatpush2.msra.mxu0 0.0
    %943 = vmatprep.subr.mxu0 0.0
    %944 = vmatpush2.msra.mxu0 0.0
    %945 = vmatprep.subr.mxu0 0.0
    %946 = vmatpush2.msra.mxu0 0.0
    %947 = vmatprep.subr.mxu0 0.0
    %948 = vmatpush2.msra.mxu0 0.0
    %949 = vmatprep.subr.mxu0 0.0
    %950 = vmatpush2.msra.mxu0 0.0
    %951 = vmatprep.subr.mxu0 0.0
    %952 = vmatpush2.msra.mxu0 0.0
    %953 = vmatprep.mubr.f32.mxu0 0.0
    %954 = vmatmul.mubr.f32.gmra.mxu0 %v884
    %v955 = vpop.f32.mrf.mxu0
    %v956 = vadd.f32 %v875, %v955
    %v957 = vpop.f32.mrf.mxu0
    %958 = vmatprep.mubr.f32.mxu0 0.0
    %959 = vmatmul.mubr.f32.gmra.mxu0 %v887
    %v960 = vpop.f32.mrf.mxu0
    %v961 = vadd.f32 %v880, %v960
    %v962 = vpop.f32.mrf.mxu0
    %963 = vdwg.mxu0
    %v964 = vadd.f32 %v798, %v800
    %v965 = vadd.f32 %v799, %v801
    %v967 = vsel %vm775, %v964, 0
    %v970 = vsel %vm775, %v965, 0
    %972 = vmatprep.subr.mxu0 0.0
    %973 = vmatpush1.msra.mxu0 0.0
    %974 = vmatprep.subr.mxu0 0.0
    %975 = vmatpush1.msra.mxu0 0.0
    %976 = vmatprep.subr.mxu0 0.0
    %977 = vmatpush1.msra.mxu0 0.0
    %978 = vmatprep.subr.mxu0 0.0
    %979 = vmatpush1.msra.mxu0 0.0
    %980 = vmatprep.subr.mxu0 0.0
    %981 = vmatpush1.msra.mxu0 0.0
    %982 = vmatprep.subr.mxu0 0.0
    %983 = vmatpush1.msra.mxu0 0.0
    %984 = vmatprep.subr.mxu0 0.0
    %985 = vmatpush1.msra.mxu0 0.0
    %986 = vmatprep.subr.mxu0 0.0
    %987 = vmatpush1.msra.mxu0 0.0
    %988 = vmatprep.subr.mxu0 0.0
    %989 = vmatpush1.msra.mxu0 0.0
    %990 = vmatprep.subr.mxu0 0.0
    %991 = vmatpush1.msra.mxu0 0.0
    %992 = vmatprep.subr.mxu0 0.0
    %993 = vmatpush1.msra.mxu0 0.0
    %994 = vmatprep.subr.mxu0 0.0
    %995 = vmatpush1.msra.mxu0 0.0
    %996 = vmatprep.subr.mxu0 0.0
    %997 = vmatpush1.msra.mxu0 0.0
    %998 = vmatprep.subr.mxu0 0.0
    %999 = vmatpush1.msra.mxu0 0.0
    %1000 = vmatprep.subr.mxu0 0.0
    %1001 = vmatpush1.msra.mxu0 %v320
    %1002 = vmatprep.subr.mxu0 0.0
    %1003 = vmatpush1.msra.mxu0 %v314
    %1004 = vmatprep.subr.mxu0 0.0
    %1005 = vmatpush2.msra.mxu0 0.0
    %1006 = vmatprep.subr.mxu0 0.0
    %1007 = vmatpush2.msra.mxu0 0.0
    %1008 = vmatprep.subr.mxu0 0.0
    %1009 = vmatpush2.msra.mxu0 0.0
    %1010 = vmatprep.subr.mxu0 0.0
    %1011 = vmatpush2.msra.mxu0 0.0
    %1012 = vmatprep.subr.mxu0 0.0
    %1013 = vmatpush2.msra.mxu0 0.0
    %1014 = vmatprep.subr.mxu0 0.0
    %1015 = vmatpush2.msra.mxu0 0.0
    %1016 = vmatprep.subr.mxu0 0.0
    %1017 = vmatpush2.msra.mxu0 0.0
    %1018 = vmatprep.subr.mxu0 0.0
    %1019 = vmatpush2.msra.mxu0 0.0
    %1020 = vmatprep.subr.mxu0 0.0
    %1021 = vmatpush2.msra.mxu0 0.0
    %1022 = vmatprep.subr.mxu0 0.0
    %1023 = vmatpush2.msra.mxu0 0.0
    %1024 = vmatprep.subr.mxu0 0.0
    %1025 = vmatpush2.msra.mxu0 0.0
    %1026 = vmatprep.subr.mxu0 0.0
    %1027 = vmatpush2.msra.mxu0 0.0
    %1028 = vmatprep.subr.mxu0 0.0
    %1029 = vmatpush2.msra.mxu0 0.0
    %1030 = vmatprep.subr.mxu0 0.0
    %1031 = vmatpush2.msra.mxu0 0.0
    %1032 = vmatprep.subr.mxu0 0.0
    %1033 = vmatpush2.msra.mxu0 0.0
    %1034 = vmatprep.subr.mxu0 0.0
    %1035 = vmatpush2.msra.mxu0 0.0
    %1036 = vmatprep.mubr.f32.mxu0 0.0
    %1037 = vmatmul.mubr.f32.gmra.mxu0 %v967
    %v1038 = vpop.f32.mrf.mxu0
    %v1039 = vadd.f32 0.0, %v1038
    %v1040 = vpop.f32.mrf.mxu0
    %1041 = vmatprep.mubr.f32.mxu0 0.0
    %1042 = vmatmul.mubr.f32.gmra.mxu0 %v970
    %v1043 = vpop.f32.mrf.mxu0
    %v1044 = vadd.f32 0.0, %v1043
    %v1045 = vpop.f32.mrf.mxu0
    %1046 = vdwg.mxu0
    %v1049 = vcombine.high %v956, %v956
    %v1051 = vunpack.c.l.s4 1983009808
    %v1052 = vunpack.c.0.s8 %v1051
    %v1053 = vlaneseq
    %v1054 = vshrl.u32 %v1053, 7
    %v1055 = vsub.s32 %v1052, %v1054
    %v1056 = vrot.slane %v956, %v1055
    %v1058 = vunpack.c.l.s4 1983009808
    %v1059 = vunpack.c.0.s8 %v1058
    %v1060 = vlaneseq
    %v1061 = vshrl.u32 %v1060, 7
    %v1062 = vsub.s32 %v1059, %v1061
    %v1063 = vrot.slane %v1049, %v1062
    %v1064 = vcombine.high %v1056, %v1056
    %v1065 = vcombine.high %v1063, %v1063
    %v1066 = vcombine.high %v961, %v961
    %v1068 = vunpack.c.l.s4 1983009808
    %v1069 = vunpack.c.0.s8 %v1068
    %v1070 = vlaneseq
    %v1071 = vshrl.u32 %v1070, 7
    %v1072 = vsub.s32 %v1069, %v1071
    %v1073 = vrot.slane %v961, %v1072
    %v1075 = vunpack.c.l.s4 1983009808
    %v1076 = vunpack.c.0.s8 %v1075
    %v1077 = vlaneseq
    %v1078 = vshrl.u32 %v1077, 7
    %v1079 = vsub.s32 %v1076, %v1078
    %v1080 = vrot.slane %v1066, %v1079
    %v1081 = vcombine.high %v1073, %v1073
    %v1082 = vcombine.high %v1080, %v1080
    %1091 = vst [vmem:[#allocation13] sm:$0x3] %v1056
    %1092 = vst [vmem:[#allocation13 + $0x4] sm:$0x3] %v1064
    %1093 = vst [vmem:[#allocation13 + $0x8] sm:$0x3] %v1063
    %1094 = vst [vmem:[#allocation13 + $0xc] sm:$0x3] %v1065
    %1095 = vst [vmem:[#allocation13 + $0x10] sm:$0x3] %v1073
    %1096 = vst [vmem:[#allocation13 + $0x14] sm:$0x3] %v1081
    %1097 = vst [vmem:[#allocation13 + $0x18] sm:$0x3] %v1080
    %1098 = vst [vmem:[#allocation13 + $0x1c] sm:$0x3] %v1082
    %v1101 = vcombine.high %v1039, %v1039
    %v1103 = vunpack.c.l.s4 1983009808
    %v1104 = vunpack.c.0.s8 %v1103
    %v1105 = vlaneseq
    %v1106 = vshrl.u32 %v1105, 7
    %v1107 = vsub.s32 %v1104, %v1106
    %v1108 = vrot.slane %v1039, %v1107
    %v1110 = vunpack.c.l.s4 1983009808
    %v1111 = vunpack.c.0.s8 %v1110
    %v1112 = vlaneseq
    %v1113 = vshrl.u32 %v1112, 7
    %v1114 = vsub.s32 %v1111, %v1113
    %v1115 = vrot.slane %v1101, %v1114
    %v1116 = vcombine.high %v1108, %v1108
    %v1117 = vcombine.high %v1115, %v1115
    %v1118 = vcombine.high %v1044, %v1044
    %v1120 = vunpack.c.l.s4 1983009808
    %v1121 = vunpack.c.0.s8 %v1120
    %v1122 = vlaneseq
    %v1123 = vshrl.u32 %v1122, 7
    %v1124 = vsub.s32 %v1121, %v1123
    %v1125 = vrot.slane %v1044, %v1124
    %v1127 = vunpack.c.l.s4 1983009808
    %v1128 = vunpack.c.0.s8 %v1127
    %v1129 = vlaneseq
    %v1130 = vshrl.u32 %v1129, 7
    %v1131 = vsub.s32 %v1128, %v1130
    %v1132 = vrot.slane %v1118, %v1131
    %v1133 = vcombine.high %v1125, %v1125
    %v1134 = vcombine.high %v1132, %v1132
    %1143 = vst [vmem:[#allocation13 + $0x2] sm:$0x3] %v1108
    %1144 = vst [vmem:[#allocation13 + $0x6] sm:$0x3] %v1116
    %1145 = vst [vmem:[#allocation13 + $0xa] sm:$0x3] %v1115
    %1146 = vst [vmem:[#allocation13 + $0xe] sm:$0x3] %v1117
    %1147 = vst [vmem:[#allocation13 + $0x12] sm:$0x3] %v1125
    %1148 = vst [vmem:[#allocation13 + $0x16] sm:$0x3] %v1133
    %1149 = vst [vmem:[#allocation13 + $0x1a] sm:$0x3] %v1132
    %1150 = vst [vmem:[#allocation13 + $0x1e] sm:$0x3] %v1134
    // Predicated region
    $region58: #{tpu_custom_call.1} parent=1 // pred_check
      _
    $region59: #{tpu_custom_call.1} parent=1 // pred_check_branch
      %1152 = sbr.rel (0) target = $region61
    $region60: #{tpu_custom_call.1} parent=1 // pred_region
      %s1154 = ssub.s32 512, 512
      %1155 = vsyncadd [#allocation4], %s1154
      %s1156 = sshll.u32 [#allocation13], 4
      %s1157 = int_to_ptr.vmem [resolvable:$true] %s1156
      %1162 = dma.vmem_to_hbm [thread:$0]  %s1157, 512, %s8, [#allocation4], 64, 64, 4
    $region61: #{tpu_custom_call.1} parent=1 // pred_fallthru
      _
    // Predicated region
    $region62: #{tpu_custom_call.1} parent=1 // pred_check
      _
    $region63: #{tpu_custom_call.1} parent=1 // pred_check_branch
      %1164 = sbr.rel (0) target = $region65
    $region64: #{tpu_custom_call.1} parent=1 // pred_region
      %1165 = dma.done [#allocation4], 512
    $region65: #{tpu_custom_call.1} parent=1 // pred_fallthru
      _
    %1166 = vsyncpa [#allocation3], 1
    %1167 = vsyncpa [#allocation6], 1
    %1168 = vsyncpa [#allocation9], 1
    %1169 = vsyncpa [#allocation12], 1
    %1170 = vsyncpa [#allocation4], 1

</llo_original>
